<compile_context>
chip_gen: v7x
topology: tpu7x:2x2x1
jax: 0.10.0
libtpu: 0.0.40
codegen_flags: <defaults>
</compile_context>

<pallas_src>
import functools

import jax
import jax.numpy as jnp
from jax.experimental import pallas as pl
from jax.experimental.pallas import tpu as pltpu

OUT_LANES = 128  # lane-dense output width (probs | value | zero padding)


def _round_up(n, m):
    return ((n + m - 1) // m) * m


def _actor_critic_kernel(x_ref, w1_ref, b1_ref, w2_ref, b2_ref, out_ref, *, act_dim):
    # x_ref:  (TB, obs_dim)
    # w1_ref: (obs_dim, 2H)      = [wa1 | wc1]            b1_ref: (1, 2H)
    # w2_ref: (2H, OUT_LANES)    = [[wa2,0,0],[0,wc2,0]]  b2_ref: (1, OUT_LANES)
    # out_ref:(TB, OUT_LANES) -> probs in lanes [0, act_dim), value in lane
    #                            act_dim, zeros elsewhere.
    x = x_ref[...]

    # ---- fused layer 1: one MXU pass, actor hidden | critic hidden ----
    # TODO(synk): K=6 is a degenerate MXU contraction; if a bundle dump shows
    # this matmul / its operand repack on the critical path, replace it with 6
    # VPU broadcast multiply-adds (accumulate x[:, k:k+1] * w1[k, :]).
    h = jnp.dot(x, w1_ref[...], preferred_element_type=jnp.float32) + b1_ref[...]
    h = jnp.maximum(h, 0.0)

    # ---- fused layer 2: block-diagonal, lane-padded -> [logits | value | 0] ----
    y = jnp.dot(h, w2_ref[...], preferred_element_type=jnp.float32) + b2_ref[...]

    # Numerically-stable softmax over the logit lanes only, computed in-place
    # on the (TB, OUT_LANES) tile via a lane mask (no slice / no concat).
    lane = jax.lax.broadcasted_iota(jnp.int32, y.shape, 1)
    is_logit = lane < act_dim
    masked = jnp.where(is_logit, y, -jnp.inf)
    m = jnp.max(masked, axis=-1, keepdims=True)
    e = jnp.exp(masked - m)                       # masked lanes -> exp(-inf) = 0
    denom = jnp.sum(e, axis=-1, keepdims=True)
    probs = e / denom                             # exact: probs sum to 1 to f32 eps

    # Single merged, lane-dense store: logit lanes hold probs, lane act_dim the
    # raw value, remaining lanes carry y == 0 (zero-padded weights/bias).
    out_ref[...] = jnp.where(is_logit, probs, y)


def fuse_params(params, out_lanes=OUT_LANES):
    """One-time parameter fusion (call at init, NOT per forward).

    Builds:
      w1 (obs, 2H) = [wa1 | wc1],   b1 (1, 2H)
      w2 (2H, out_lanes) block-diagonal + zero lane padding, b2 (1, out_lanes)
    """
    H = params["wa1"].shape[1]
    act_dim = params["wa2"].shape[1]
    dt = params["wa1"].dtype

    w1 = jnp.concatenate([params["wa1"], params["wc1"]], axis=1)       # (obs, 2H)
    b1 = jnp.concatenate([params["ba1"], params["bc1"]], axis=1)       # (1, 2H)

    w2 = jnp.zeros((2 * H, out_lanes), dt)
    w2 = w2.at[:H, :act_dim].set(params["wa2"])                        # actor block
    w2 = w2.at[H:, act_dim].set(params["wc2"][:, 0])                   # critic column
    b2 = jnp.zeros((1, out_lanes), dt)
    b2 = b2.at[0, :act_dim].set(params["ba2"][0])
    b2 = b2.at[0, act_dim].set(params["bc2"][0, 0])

    return {"w1": w1, "b1": b1, "w2": w2, "b2": b2,
            "act_dim": act_dim, "hidden": H}


def actor_critic_forward(x, fused, *, block_b=2048):
    """x: (B, obs_dim) float32. fused: output of fuse_params().

    Returns (probs (B, act_dim), value (B, 1))."""
    B, obs_dim = x.shape
    act_dim = fused["act_dim"]
    H = fused["hidden"]
    out_lanes = fused["w2"].shape[1]

    # ---- balanced batch tiling: g grid steps, tb = cdiv(B, g) rounded to 8 ----
    g = pl.cdiv(B, block_b)
    if B >= 16:
        g = max(g, 2)            # v7x: >=2 steps so both TensorCores get work
    tb = _round_up(pl.cdiv(B, g), 8)
    b_pad = g * tb
    if b_pad != B:
        x = jnp.pad(x, ((0, b_pad - B), (0, 0)))

    kernel = functools.partial(_actor_critic_kernel, act_dim=act_dim)

    cost = pl.CostEstimate(
        flops=2 * b_pad * (obs_dim * 2 * H + 2 * H * out_lanes),
        transcendentals=b_pad * out_lanes,
        bytes_accessed=b_pad * (obs_dim + out_lanes) * 4,
    )

    out = pl.pallas_call(
        kernel,
        out_shape=jax.ShapeDtypeStruct((b_pad, out_lanes), jnp.float32),
        grid=(g,),
        in_specs=[
            pl.BlockSpec((tb, obs_dim), lambda i: (i, 0)),        # x tiled over batch
            pl.BlockSpec((obs_dim, 2 * H), lambda i: (0, 0)),     # fused W1 (resident)
            pl.BlockSpec((1, 2 * H), lambda i: (0, 0)),           # fused b1
            pl.BlockSpec((2 * H, out_lanes), lambda i: (0, 0)),   # block-diag W2 (padded)
            pl.BlockSpec((1, out_lanes), lambda i: (0, 0)),       # fused b2 (padded)
        ],
        out_specs=pl.BlockSpec((tb, out_lanes), lambda i: (i, 0)),
        compiler_params=pltpu.CompilerParams(
            dimension_semantics=("parallel",)),                   # v7x: 2 TCs
        cost_estimate=cost,
    )(x, fused["w1"], fused["b1"], fused["w2"], fused["b2"])

    probs = out[:B, :act_dim]
    value = out[:B, act_dim:act_dim + 1]
    return probs, value


def init_params(key, obs_dim, act_dim, hidden=128):
    """Deterministic init mimicking PyTorch nn.Linear default
    (uniform(-1/sqrt(fan_in), 1/sqrt(fan_in))). Weights stored as (in, out)."""
    ks = jax.random.split(key, 8)

    def unif(k, shape, fan_in):
        bound = 1.0 / jnp.sqrt(jnp.float32(fan_in))
        return jax.random.uniform(k, shape, jnp.float32, -bound, bound)

    return {
        # actor
        "wa1": unif(ks[0], (obs_dim, hidden), obs_dim),
        "ba1": unif(ks[1], (1, hidden), obs_dim),
        "wa2": unif(ks[2], (hidden, act_dim), hidden),
        "ba2": unif(ks[3], (1, act_dim), hidden),
        # critic
        "wc1": unif(ks[4], (obs_dim, hidden), obs_dim),
        "bc1": unif(ks[5], (1, hidden), obs_dim),
        "wc2": unif(ks[6], (hidden, 1), hidden),
        "bc2": unif(ks[7], (1, 1), hidden),
    }


def _reference_forward(x, p):
    """Pure-JAX reference for correctness check."""
    hi = jax.lax.Precision.HIGHEST
    h_a = jnp.maximum(jnp.dot(x, p["wa1"], precision=hi) + p["ba1"], 0.0)
    logits = jnp.dot(h_a, p["wa2"], precision=hi) + p["ba2"]
    probs = jax.nn.softmax(logits, axis=-1)
    h_c = jnp.maximum(jnp.dot(x, p["wc1"], precision=hi) + p["bc1"], 0.0)
    value = jnp.dot(h_c, p["wc2"], precision=hi) + p["bc2"]
    return probs, value


if __name__ == "__main__":
    # Acrobot-v1: obs_dim=6, act_dim=3. Small batch of states.
    OBS_DIM, ACT_DIM, HIDDEN, BATCH = 6, 3, 128, 64

    key = jax.random.PRNGKey(0)
    k_param, k_x = jax.random.split(key)
    params = init_params(k_param, OBS_DIM, ACT_DIM, HIDDEN)
    x = jax.random.normal(k_x, (BATCH, OBS_DIM), dtype=jnp.float32)

    # Fuse weights ONCE (hoisted out of the per-call forward path).
    fused = fuse_params(params)

    probs, value = actor_critic_forward(x, fused)
    jax.block_until_ready((probs, value))

    # sanity check against pure-JAX reference
    ref_probs, ref_value = _reference_forward(x, params)
    assert probs.shape == (BATCH, ACT_DIM)
    assert value.shape == (BATCH, 1)
    assert jnp.allclose(probs, ref_probs, atol=2e-3, rtol=2e-3)
    assert jnp.allclose(value, ref_value, atol=2e-3, rtol=2e-3)
    # exact division in the kernel softmax -> rows sum to 1 to f32 eps
    assert jnp.allclose(jnp.sum(probs, axis=-1), 1.0, atol=1e-5)

    print("KERNEL_OK")
</pallas_src>

<mosaic_0001>
module attributes {stable_mosaic.version = 11 : i64} {
  func.func @_actor_critic_kernel(%arg0: i32, %arg1: memref<32x6xf32, #tpu.memory_space<vmem>>, %arg2: memref<6x256xf32, #tpu.memory_space<vmem>>, %arg3: memref<1x256xf32, #tpu.memory_space<vmem>>, %arg4: memref<256x128xf32, #tpu.memory_space<vmem>>, %arg5: memref<1x128xf32, #tpu.memory_space<vmem>>, %arg6: memref<32x128xf32, #tpu.memory_space<vmem>>) attributes {dimension_semantics = [#tpu.dimension_semantics<parallel>], iteration_bounds = array<i64: 2>, scalar_prefetch = 0 : i64, scratch_operands = 0 : i64, tpu.core_type = #tpu.core_type<tc>, window_params = [{transform_indices = @transform_0, window_bounds = array<i64: 32, 6>}, {pipeline_mode = #tpu.pipeline_mode<synchronous>, transform_indices = @transform_1, window_bounds = array<i64: 6, 256>}, {pipeline_mode = #tpu.pipeline_mode<synchronous>, transform_indices = @transform_2, window_bounds = array<i64: 1, 256>}, {pipeline_mode = #tpu.pipeline_mode<synchronous>, transform_indices = @transform_3, window_bounds = array<i64: 256, 128>}, {pipeline_mode = #tpu.pipeline_mode<synchronous>, transform_indices = @transform_4, window_bounds = array<i64: 1, 128>}, {transform_indices = @transform_5, window_bounds = array<i64: 32, 128>}]} {
    %c0 = arith.constant 0 : index
    %c0_0 = arith.constant 0 : index
    %0 = vector.load %arg1[%c0, %c0_0] : memref<32x6xf32, #tpu.memory_space<vmem>>, vector<32x6xf32>
    %c0_1 = arith.constant 0 : index
    %c0_2 = arith.constant 0 : index
    %1 = vector.load %arg2[%c0_1, %c0_2] : memref<6x256xf32, #tpu.memory_space<vmem>>, vector<6x256xf32>
    %cst = arith.constant dense<0.000000e+00> : vector<32x256xf32>
    %2 = tpu.matmul %0, %1, %cst {dimension_numbers = #tpu.dot_dimension_numbers<[1], [0], [0], [1], [0, 0, 1, 1], [], []>} : vector<32x6xf32>, vector<6x256xf32>, vector<32x256xf32> -> vector<32x256xf32>
    %c0_3 = arith.constant 0 : index
    %c0_4 = arith.constant 0 : index
    %3 = vector.load %arg3[%c0_3, %c0_4] : memref<1x256xf32, #tpu.memory_space<vmem>>, vector<1x256xf32>
    %4 = vector.broadcast %3 : vector<1x256xf32> to vector<32x256xf32>
    %5 = arith.addf %2, %4 : vector<32x256xf32>
    %cst_5 = arith.constant 0.000000e+00 : f32
    %6 = vector.broadcast %cst_5 : f32 to vector<32x256xf32>
    %7 = arith.maximumf %5, %6 : vector<32x256xf32>
    %c0_6 = arith.constant 0 : index
    %c0_7 = arith.constant 0 : index
    %8 = vector.load %arg4[%c0_6, %c0_7] : memref<256x128xf32, #tpu.memory_space<vmem>>, vector<256x128xf32>
    %cst_8 = arith.constant dense<0.000000e+00> : vector<32x128xf32>
    %9 = tpu.matmul %7, %8, %cst_8 {dimension_numbers = #tpu.dot_dimension_numbers<[1], [0], [0], [1], [0, 0, 1, 1], [], []>} : vector<32x256xf32>, vector<256x128xf32>, vector<32x128xf32> -> vector<32x128xf32>
    %c0_9 = arith.constant 0 : index
    %c0_10 = arith.constant 0 : index
    %10 = vector.load %arg5[%c0_9, %c0_10] : memref<1x128xf32, #tpu.memory_space<vmem>>, vector<1x128xf32>
    %11 = vector.broadcast %10 : vector<1x128xf32> to vector<32x128xf32>
    %12 = arith.addf %9, %11 : vector<32x128xf32>
    %13 = tpu.iota {dimensions = array<i32: 1>} : vector<32x128xi32>
    %c3_i32 = arith.constant 3 : i32
    %14 = vector.broadcast %c3_i32 : i32 to vector<32x128xi32>
    %15 = arith.cmpi slt, %13, %14 : vector<32x128xi32>
    %cst_11 = arith.constant 0xFF800000 : f32
    %16 = vector.broadcast %cst_11 : f32 to vector<32x128xf32>
    %17 = arith.select %15, %12, %16 : vector<32x128xi1>, vector<32x128xf32>
    %cst_12 = arith.constant dense<0xFF800000> : vector<32xf32>
    %18 = vector.multi_reduction <maximumf>, %17, %cst_12 [1] : vector<32x128xf32> to vector<32xf32>
    %19 = vector.shape_cast %18 : vector<32xf32> to vector<32x1xf32>
    %20 = vector.broadcast %19 : vector<32x1xf32> to vector<32x128xf32>
    %21 = arith.subf %17, %20 : vector<32x128xf32>
    %22 = math.exp %21 : vector<32x128xf32>
    %cst_13 = arith.constant dense<0.000000e+00> : vector<32xf32>
    %23 = vector.multi_reduction <add>, %22, %cst_13 [1] : vector<32x128xf32> to vector<32xf32>
    %24 = vector.shape_cast %23 : vector<32xf32> to vector<32x1xf32>
    %25 = vector.broadcast %24 : vector<32x1xf32> to vector<32x128xf32>
    %26 = arith.divf %22, %25 : vector<32x128xf32>
    %27 = arith.select %15, %26, %12 : vector<32x128xi1>, vector<32x128xf32>
    %c0_14 = arith.constant 0 : index
    %c0_15 = arith.constant 0 : index
    %28 = vector.load %arg6[%c0_14, %c0_15] : memref<32x128xf32, #tpu.memory_space<vmem>>, vector<32x128xf32>
    tpu.vector_store %arg6[%c0_14, %c0_15], %27 {strides = array<i32>} : memref<32x128xf32, #tpu.memory_space<vmem>>, vector<32x128xf32>,
    return
  }
  func.func @transform_0(%arg0: i32) -> (i32, i32) {
    %c0_i32 = arith.constant 0 : i32
    %c0_i32_0 = arith.constant 0 : i32
    return %arg0, %c0_i32 : i32, i32
  }
  func.func @transform_1(%arg0: i32) -> (i32, i32) {
    %c0_i32 = arith.constant 0 : i32
    %c0_i32_0 = arith.constant 0 : i32
    %c0_i32_1 = arith.constant 0 : i32
    return %c0_i32, %c0_i32_0 : i32, i32
  }
  func.func @transform_2(%arg0: i32) -> (i32, i32) {
    %c0_i32 = arith.constant 0 : i32
    %c0_i32_0 = arith.constant 0 : i32
    %c0_i32_1 = arith.constant 0 : i32
    return %c0_i32, %c0_i32_0 : i32, i32
  }
  func.func @transform_3(%arg0: i32) -> (i32, i32) {
    %c0_i32 = arith.constant 0 : i32
    %c0_i32_0 = arith.constant 0 : i32
    %c0_i32_1 = arith.constant 0 : i32
    return %c0_i32, %c0_i32_0 : i32, i32
  }
  func.func @transform_4(%arg0: i32) -> (i32, i32) {
    %c0_i32 = arith.constant 0 : i32
    %c0_i32_0 = arith.constant 0 : i32
    %c0_i32_1 = arith.constant 0 : i32
    return %c0_i32, %c0_i32_0 : i32, i32
  }
  func.func @transform_5(%arg0: i32) -> (i32, i32) {
    %c0_i32 = arith.constant 0 : i32
    %c0_i32_0 = arith.constant 0 : i32
    return %arg0, %c0_i32 : i32, i32
  }
}

</mosaic_0001>

<llo_original>
// kernel: tpu_custom_call.1
$region0: #{tpu_custom_call.1}
  #allocation0 [shape = 'u32[]', space=smem, size = 0x4, offset = 0x4, fixed_abs, tag = 'smem constant byte address 0x4 - core index']
  #allocation1 [shape = 'u32[144,128]{1,0:T(1,128)}', space=vmem, size = 0x12000, scoped, tag = 'internal scratch']
  %s0 = inlined_call_operand.vmem [shape: f32[64,6], index: 0, kind: input, shape index: {}]
  %s1 = inlined_call_operand.vmem [shape: f32[6,256], index: 1, kind: input, shape index: {}]
  %s2 = inlined_call_operand.vmem [shape: f32[1,256], index: 2, kind: input, shape index: {}]
  %s3 = inlined_call_operand.hbm [shape: f32[256,128], index: 3, kind: input, shape index: {}]
  %s4 = inlined_call_operand.vmem [shape: f32[1,128], index: 4, kind: input, shape index: {}]
  %s5 = inlined_call_operand.hbm [shape: f32[64,128], index: 5, kind: output, shape index: {}]
  %s6 = sld [smem:[#allocation0]]
  $region57: #{tpu_custom_call.1} parent=0
    _
  %s8 = ssub.s32 1, %s6
  %s9 = scalar_select 0, %s8, %s6
  $region1: #{tpu_custom_call.1} parent=0
    #allocation2 [shape = 'u8[131072]{0}', space=vmem, size = 0x20000, scoped, tag = 'input window, operand 3, single buffered']
    #allocation3 [shape = 's32[2]{0}', space=sflag, size = 0x8, scoped, tag = 'scoped memory for tpu_custom_call.1']
    #allocation4 [shape = 's32[2]{0}', space=sflag, size = 0x8, scoped, tag = 'scoped memory for tpu_custom_call.1']
    #allocation5 [shape = 'u8[32768]{0}', space=vmem, size = 0x8000, scoped, tag = 'output window, operand 0']
    %10 = vsyncpa [#allocation3], 0
    %11 = vsyncpa [#allocation4], 0
    %s12 = scalar_lea.sflag [#allocation4], 1
    %13 = vsyncpa %s12, 0
    loop: start=0, step=1, limit=4
    $region2: #{tpu_custom_call.1} parent=1 // loop_pre_header
      _
    $region3: #{tpu_custom_call.1} parent=1 // loop_header
      %s15 = sphi 0, %s19
      %p16 = scmp.ge.s32.totalorder %s15, 4
      %s25 = sphi 0, %s27
      %s28 = sphi 0, %s25
      %s29 = sphi 0, %s28
      %s45 = sphi 0, %s29
      %s49 = sphi 0, %s49
      %s51 = sphi 0, %s49
      %s52 = sphi 0, %s51
      %s66 = sphi 0, %s52
      %s70 = sphi 0, %s70
      %s72 = sphi 0, %s70
      %s73 = sphi 0, %s72
      %s87 = sphi 0, %s73
      %s91 = sphi 0, %s91
      %s93 = sphi 0, %s91
      %s94 = sphi 0, %s93
      %s108 = sphi 0, %s94
      %s112 = sphi 0, %s112
      %s114 = sphi 0, %s112
      %s115 = sphi 0, %s114
      %s129 = sphi 0, %s115
      %s135 = sphi 0, %s137
      %s138 = sphi 0, %s135
      %s139 = sphi 0, %s138
      %s155 = sphi 0, %s139
    $region4: #{tpu_custom_call.1} parent=1 // loop_header_branch
      %18 = sbr.rel (%p16) target = $region8
    $region5: #{tpu_custom_call.1} parent=1 // loop_body
      %s20 = ssub.s32 %s15, 1
      %s21 = ssub.s32 %s15, 2
      %s22 = sadd.s32 %s15, 1
      %s23 = ssub.s32 %s15, %s22
      %p24 = scmp.eq.s32.totalorder %s23, 0
      %s26 = sadd.s32 %s25, 1
      %s27 = scalar_select %p24, %s25, %s26
      %p30 = pneg %p24
      %p31 = scmp.eq.s32.totalorder %s15, 1
      %p32 = por %p30, %p31
      %p33 = scmp.ne.s32.totalorder %s25, %s28
      %p34 = scmp.eq.s32.totalorder %s15, 0
      %p35 = por %p33, %p34
      %p36 = scmp.ne.s32.totalorder %s25, %s28
      %p37 = scmp.eq.s32.totalorder %s20, 1
      %p38 = por %p36, %p37
      %p39 = scmp.ne.s32.totalorder %s28, %s29
      %p40 = scmp.eq.s32.totalorder %s20, 0
      %p41 = por %p39, %p40
      %p42 = scmp.ne.s32.totalorder %s28, %s29
      %p43 = scmp.eq.s32.totalorder %s21, 1
      %p44 = por %p42, %p43
      %p46 = scmp.ne.s32.totalorder %s29, %s45
      %p47 = scmp.eq.s32.totalorder %s21, 0
      %p48 = por %p46, %p47
      %s50 = sadd.s32 %s49, 1
      %p53 = scmp.eq.s32.totalorder %s15, 1
      %p54 = scmp.ne.s32.totalorder %s49, %s51
      %p55 = scmp.eq.s32.totalorder %s15, 0
      %p56 = por %p54, %p55
      %p57 = scmp.ne.s32.totalorder %s49, %s51
      %p58 = scmp.eq.s32.totalorder %s20, 1
      %p59 = por %p57, %p58
      %p60 = scmp.ne.s32.totalorder %s51, %s52
      %p61 = scmp.eq.s32.totalorder %s20, 0
      %p62 = por %p60, %p61
      %p63 = scmp.ne.s32.totalorder %s51, %s52
      %p64 = scmp.eq.s32.totalorder %s21, 1
      %p65 = por %p63, %p64
      %p67 = scmp.ne.s32.totalorder %s52, %s66
      %p68 = scmp.eq.s32.totalorder %s21, 0
      %p69 = por %p67, %p68
      %s71 = sadd.s32 %s70, 1
      %p74 = scmp.eq.s32.totalorder %s15, 1
      %p75 = scmp.ne.s32.totalorder %s70, %s72
      %p76 = scmp.eq.s32.totalorder %s15, 0
      %p77 = por %p75, %p76
      %p78 = scmp.ne.s32.totalorder %s70, %s72
      %p79 = scmp.eq.s32.totalorder %s20, 1
      %p80 = por %p78, %p79
      %p81 = scmp.ne.s32.totalorder %s72, %s73
      %p82 = scmp.eq.s32.totalorder %s20, 0
      %p83 = por %p81, %p82
      %p84 = scmp.ne.s32.totalorder %s72, %s73
      %p85 = scmp.eq.s32.totalorder %s21, 1
      %p86 = por %p84, %p85
      %p88 = scmp.ne.s32.totalorder %s73, %s87
      %p89 = scmp.eq.s32.totalorder %s21, 0
      %p90 = por %p88, %p89
      %s92 = sadd.s32 %s91, 1
      %p95 = scmp.eq.s32.totalorder %s15, 1
      %p96 = scmp.ne.s32.totalorder %s91, %s93
      %p97 = scmp.eq.s32.totalorder %s15, 0
      %p98 = por %p96, %p97
      %p99 = scmp.ne.s32.totalorder %s91, %s93
      %p100 = scmp.eq.s32.totalorder %s20, 1
      %p101 = por %p99, %p100
      %p102 = scmp.ne.s32.totalorder %s93, %s94
      %p103 = scmp.eq.s32.totalorder %s20, 0
      %p104 = por %p102, %p103
      %p105 = scmp.ne.s32.totalorder %s93, %s94
      %p106 = scmp.eq.s32.totalorder %s21, 1
      %p107 = por %p105, %p106
      %p109 = scmp.ne.s32.totalorder %s94, %s108
      %p110 = scmp.eq.s32.totalorder %s21, 0
      %p111 = por %p109, %p110
      %s113 = sadd.s32 %s112, 1
      %p116 = scmp.eq.s32.totalorder %s15, 1
      %p117 = scmp.ne.s32.totalorder %s112, %s114
      %p118 = scmp.eq.s32.totalorder %s15, 0
      %p119 = por %p117, %p118
      %p120 = scmp.ne.s32.totalorder %s112, %s114
      %p121 = scmp.eq.s32.totalorder %s20, 1
      %p122 = por %p120, %p121
      %p123 = scmp.ne.s32.totalorder %s114, %s115
      %p124 = scmp.eq.s32.totalorder %s20, 0
      %p125 = por %p123, %p124
      %p126 = scmp.ne.s32.totalorder %s114, %s115
      %p127 = scmp.eq.s32.totalorder %s21, 1
      %p128 = por %p126, %p127
      %p130 = scmp.ne.s32.totalorder %s115, %s129
      %p131 = scmp.eq.s32.totalorder %s21, 0
      %p132 = por %p130, %p131
      %s133 = ssub.s32 %s15, %s22
      %p134 = scmp.eq.s32.totalorder %s133, 0
      %s136 = sadd.s32 %s135, 1
      %s137 = scalar_select %p134, %s135, %s136
      %p140 = pneg %p134
      %p141 = scmp.eq.s32.totalorder %s15, 1
      %p142 = por %p140, %p141
      %p143 = scmp.ne.s32.totalorder %s135, %s138
      %p144 = scmp.eq.s32.totalorder %s15, 0
      %p145 = por %p143, %p144
      %p146 = scmp.ne.s32.totalorder %s135, %s138
      %p147 = scmp.eq.s32.totalorder %s20, 1
      %p148 = por %p146, %p147
      %p149 = scmp.ne.s32.totalorder %s138, %s139
      %p150 = scmp.eq.s32.totalorder %s20, 0
      %p151 = por %p149, %p150
      %p152 = scmp.ne.s32.totalorder %s138, %s139
      %p153 = scmp.eq.s32.totalorder %s21, 1
      %p154 = por %p152, %p153
      %p156 = scmp.ne.s32.totalorder %s139, %s155
      %p157 = scmp.eq.s32.totalorder %s21, 0
      %p158 = por %p156, %p157
      %p159 = scmp.le.s32.totalorder 1, %s15
      %p160 = scmp.lt.s32.totalorder %s15, 3
      %p161 = pnand %p159, %p160
      %p162 = pneg %p161
      // Predicated region
      $region9: #{tpu_custom_call.1} parent=5 // pred_check
        _
      $region10: #{tpu_custom_call.1} parent=5 // pred_check_branch
        %164 = sbr.rel (%p161) target = $region12
      $region11: #{tpu_custom_call.1} parent=5 // pred_region
        %s165 = ssub.s32 %s15, 1
        // Predicated region
        $region13: #{tpu_custom_call.1} parent=11 // pred_check
          %p166 = pneg %p62
        $region14: #{tpu_custom_call.1} parent=11 // pred_check_branch
          %168 = sbr.rel (%p166) target = $region16
        $region15: #{tpu_custom_call.1} parent=11 // pred_region
          _
        $region16: #{tpu_custom_call.1} parent=11 // pred_fallthru
          _
        // Predicated region
        $region17: #{tpu_custom_call.1} parent=11 // pred_check
          %p169 = pneg %p83
        $region18: #{tpu_custom_call.1} parent=11 // pred_check_branch
          %171 = sbr.rel (%p169) target = $region20
        $region19: #{tpu_custom_call.1} parent=11 // pred_region
          _
        $region20: #{tpu_custom_call.1} parent=11 // pred_fallthru
          _
        // Predicated region
        $region21: #{tpu_custom_call.1} parent=11 // pred_check
          %p172 = pneg %p104
        $region22: #{tpu_custom_call.1} parent=11 // pred_check_branch
          %174 = sbr.rel (%p172) target = $region24
        $region23: #{tpu_custom_call.1} parent=11 // pred_region
          %s176 = ssub.s32 4096, 4096
          %177 = vsyncadd [#allocation3], %s176
          %s178 = sshll.u32 [#allocation2], 4
          %s179 = int_to_ptr.vmem [resolvable:$true] %s178
          %184 = dma.hbm_to_vmem [thread:$0]  %s3, 4096, %s179, [#allocation3], 128, 128, 8
        $region24: #{tpu_custom_call.1} parent=11 // pred_fallthru
          _
        // Predicated region
        $region25: #{tpu_custom_call.1} parent=11 // pred_check
          %p185 = pneg %p125
        $region26: #{tpu_custom_call.1} parent=11 // pred_check_branch
          %187 = sbr.rel (%p185) target = $region28
        $region27: #{tpu_custom_call.1} parent=11 // pred_region
          _
        $region28: #{tpu_custom_call.1} parent=11 // pred_fallthru
          _
      $region12: #{tpu_custom_call.1} parent=5 // pred_fallthru
        _
      %p188 = scmp.lt.s32.totalorder %s15, 2
      // Predicated region
      $region29: #{tpu_custom_call.1} parent=5 // pred_check
        %p189 = pneg %p188
      $region30: #{tpu_custom_call.1} parent=5 // pred_check_branch
        %191 = sbr.rel (%p189) target = $region32
      $region31: #{tpu_custom_call.1} parent=5 // pred_region
        // Predicated region
        $region33: #{tpu_custom_call.1} parent=31 // pred_check
          %p192 = pneg %p35
        $region34: #{tpu_custom_call.1} parent=31 // pred_check_branch
          %194 = sbr.rel (%p192) target = $region36
        $region35: #{tpu_custom_call.1} parent=31 // pred_region
          %s195 = smul.u32 4, %s15
          %p196 = scmp.lt.s32.totalorder %s195, 7
          %s197 = scalar_select %p196, %s195, 7
          %s198 = smul.addr %s197, 8
          %s199 = scalar_lea.vmem %s0, %s198
          %s200 = smul.u32 4, %s15
        $region36: #{tpu_custom_call.1} parent=31 // pred_fallthru
          _
      $region32: #{tpu_custom_call.1} parent=5 // pred_fallthru
        _
      %p201 = scmp.le.s32.totalorder 1, %s15
      %p202 = scmp.lt.s32.totalorder %s15, 3
      %p203 = pnand %p201, %p202
      %p204 = pneg %p203
      // Predicated region
      $region37: #{tpu_custom_call.1} parent=5 // pred_check
        _
      $region38: #{tpu_custom_call.1} parent=5 // pred_check_branch
        %206 = sbr.rel (%p203) target = $region40
      $region39: #{tpu_custom_call.1} parent=5 // pred_region
        %s207 = ssub.s32 %s15, 1
        // Predicated region
        $region41: #{tpu_custom_call.1} parent=39 // pred_check
          %p208 = pneg %p104
        $region42: #{tpu_custom_call.1} parent=39 // pred_check_branch
          %210 = sbr.rel (%p208) target = $region44
        $region43: #{tpu_custom_call.1} parent=39 // pred_region
          %211 = dma.done [#allocation3], 4096
        $region44: #{tpu_custom_call.1} parent=39 // pred_fallthru
          _
        %s212 = smul.u32 4, %s20
        %p213 = scmp.lt.s32.totalorder %s212, 7
        %s214 = scalar_select %p213, %s212, 7
        %s215 = smul.addr %s214, 8
        %s216 = scalar_lea.vmem %s0, %s215
        %p217 = pneg %p41
        %p218 = pneg %p38
        %p219 = pneg %p62
        %p220 = pneg %p59
        %p221 = pneg %p83
        %p222 = pneg %p80
        %p223 = pneg %p104
        %p224 = pneg %p101
        %p225 = pneg %p125
        %p226 = pneg %p122
        %p227 = pneg %p151
        %p228 = pneg %p148
        %s229 = sand.u32 %s138, 1
        %s230 = scalar_lea.sflag [#allocation4], %s229
        %s231 = sand.u32 %s138, 1
        %s232 = smul.addr %s231, 32
        %s233 = scalar_lea.vmem [#allocation5], %s232
        %s234 = smul.u32 4, %s20
        %p235 = scmp.lt.s32.totalorder %s234, 7
        %s236 = scalar_select %p235, %s234, 7
        %s237 = smul.addr %s236, 8
        %s238 = scalar_lea.vmem %s0, %s237
        %s239 = smul.u32 4, %s20
        %s240 = smul.u32 4, %s20
        %v241 = vld [vmem:[%s238] sm:$0xff]
        %v242 = vld [vmem:[%s238 + $0x8] sm:$0xff]
        %v243 = vld [vmem:[%s238 + $0x10] sm:$0xff]
        %v244 = vld [vmem:[%s238 + $0x18] sm:$0xff]
        %v245 = vld [vmem:[%s1] sm:$0x3f]
        %v246 = vld [vmem:[%s1 + $0x8] sm:$0x3f]
        %v247 = vld [vmem:[%s2] sm:$0x3]
        %v249 = vlaneseq
        %v250 = vshrl.u32 %v249, 7
        %v251 = vsub.s32 0, %v250
        %v252 = vrot.slane %v247, %v251
        %v253 = vlaneseq
        %v254 = vshrl.u32 %v253, 7
        %v255 = vsub.s32 1, %v254
        %v256 = vrot.slane %v247, %v255
        %vm259 = vcmask 48128
        %v261 = vsel %vm259, %v241, 0
        %v264 = vsel %vm259, %v242, 0
        %v267 = vsel %vm259, %v243, 0
        %v270 = vsel %vm259, %v244, 0
        %vm272 = vcmask 1045504
        %v274 = vsel %vm272, %v245, 0
        %v277 = vsel %vm272, %v246, 0
        %279 = vmatprep.subr.mxu0 %v277
        %280 = vmatpush1.msra.mxu0 %v274
        %281 = vmatprep.subr.mxu0 0.0
        %282 = vmatpush1.msra.mxu0 0.0
        %283 = vmatprep.subr.mxu0 0.0
        %284 = vmatpush1.msra.mxu0 0.0
        %285 = vmatprep.subr.mxu0 0.0
        %286 = vmatpush1.msra.mxu0 0.0
        %287 = vmatprep.subr.mxu0 0.0
        %288 = vmatpush1.msra.mxu0 0.0
        %289 = vmatprep.subr.mxu0 0.0
        %290 = vmatpush1.msra.mxu0 0.0
        %291 = vmatprep.subr.mxu0 0.0
        %292 = vmatpush1.msra.mxu0 0.0
        %293 = vmatprep.subr.mxu0 0.0
        %294 = vmatpush1.msra.mxu0 0.0
        %295 = vmatprep.subr.mxu0 0.0
        %296 = vmatpush1.msra.mxu0 0.0
        %297 = vmatprep.subr.mxu0 0.0
        %298 = vmatpush1.msra.mxu0 0.0
        %299 = vmatprep.subr.mxu0 0.0
        %300 = vmatpush1.msra.mxu0 0.0
        %301 = vmatprep.subr.mxu0 0.0
        %302 = vmatpush1.msra.mxu0 0.0
        %303 = vmatprep.subr.mxu0 0.0
        %304 = vmatpush1.msra.mxu0 0.0
        %305 = vmatprep.subr.mxu0 0.0
        %306 = vmatpush1.msra.mxu0 0.0
        %307 = vmatprep.subr.mxu0 0.0
        %308 = vmatpush1.msra.mxu0 0.0
        %309 = vmatprep.subr.mxu0 0.0
        %310 = vmatpush1.msra.mxu0 0.0
        %311 = vmatprep.subr.mxu0 0.0
        %312 = vmatpush1.msra.mxu0 0.0
        %313 = vmatprep.subr.mxu0 0.0
        %314 = vmatpush1.msra.mxu0 0.0
        %315 = vmatprep.subr.mxu0 0.0
        %316 = vmatpush1.msra.mxu0 0.0
        %317 = vmatprep.subr.mxu0 0.0
        %318 = vmatpush1.msra.mxu0 0.0
        %319 = vmatprep.subr.mxu0 0.0
        %320 = vmatpush1.msra.mxu0 0.0
        %321 = vmatprep.subr.mxu0 0.0
        %322 = vmatpush1.msra.mxu0 0.0
        %323 = vmatprep.subr.mxu0 0.0
        %324 = vmatpush1.msra.mxu0 0.0
        %325 = vmatprep.subr.mxu0 0.0
        %326 = vmatpush1.msra.mxu0 0.0
        %327 = vmatprep.subr.mxu0 0.0
        %328 = vmatpush1.msra.mxu0 0.0
        %329 = vmatprep.subr.mxu0 0.0
        %330 = vmatpush1.msra.mxu0 0.0
        %331 = vmatprep.subr.mxu0 0.0
        %332 = vmatpush1.msra.mxu0 0.0
        %333 = vmatprep.subr.mxu0 0.0
        %334 = vmatpush1.msra.mxu0 0.0
        %335 = vmatprep.subr.mxu0 0.0
        %336 = vmatpush1.msra.mxu0 0.0
        %337 = vmatprep.subr.mxu0 0.0
        %338 = vmatpush1.msra.mxu0 0.0
        %339 = vmatprep.subr.mxu0 0.0
        %340 = vmatpush1.msra.mxu0 0.0
        %341 = vmatprep.subr.mxu0 0.0
        %342 = vmatpush1.msra.mxu0 0.0
        %343 = vmatprep.mubr.f32.mxu0 0.0
        %344 = vmatmul.mubr.f32.gmra.mrb[0].mxu0 %v261
        %v345 = vpop.f32.mrb[0].mxu0
        %v346 = vadd.f32 %v252, %v345
        %v347 = vpop.f32.mrb[0].mxu0
        %v348 = vadd.f32 %v256, %v347
        %349 = vmatprep.mubr.f32.mxu0 0.0
        %350 = vmatmul.mubr.f32.gmra.mrb[0].mxu0 %v264
        %v351 = vpop.f32.mrb[0].mxu0
        %v352 = vadd.f32 %v252, %v351
        %v353 = vpop.f32.mrb[0].mxu0
        %v354 = vadd.f32 %v256, %v353
        %355 = vmatprep.mubr.f32.mxu0 0.0
        %356 = vmatmul.mubr.f32.gmra.mrb[0].mxu0 %v267
        %v357 = vpop.f32.mrb[0].mxu0
        %v358 = vadd.f32 %v252, %v357
        %v359 = vpop.f32.mrb[0].mxu0
        %v360 = vadd.f32 %v256, %v359
        %361 = vmatprep.mubr.f32.mxu0 0.0
        %362 = vmatmul.mubr.f32.gmra.mrb[0].mxu0 %v270
        %v363 = vpop.f32.mrb[0].mxu0
        %v364 = vadd.f32 %v252, %v363
        %v365 = vpop.f32.mrb[0].mxu0
        %v366 = vadd.f32 %v256, %v365
        %367 = vdwg.mxu0
        %v368 = vmax.f32 %v346, 0.0
        %v369 = vmax.f32 %v348, 0.0
        %v370 = vmax.f32 %v352, 0.0
        %v371 = vmax.f32 %v354, 0.0
        %v372 = vmax.f32 %v358, 0.0
        %v373 = vmax.f32 %v360, 0.0
        %v374 = vmax.f32 %v364, 0.0
        %v375 = vmax.f32 %v366, 0.0
        %v376 = vld [vmem:[#allocation2] sm:$0xff]
        %v377 = vld [vmem:[#allocation2 + $0x8] sm:$0xff]
        %v378 = vld [vmem:[#allocation2 + $0x10] sm:$0xff]
        %v379 = vld [vmem:[#allocation2 + $0x18] sm:$0xff]
        %v380 = vld [vmem:[#allocation2 + $0x20] sm:$0xff]
        %v381 = vld [vmem:[#allocation2 + $0x28] sm:$0xff]
        %v382 = vld [vmem:[#allocation2 + $0x30] sm:$0xff]
        %v383 = vld [vmem:[#allocation2 + $0x38] sm:$0xff]
        %v384 = vld [vmem:[#allocation2 + $0x40] sm:$0xff]
        %v385 = vld [vmem:[#allocation2 + $0x48] sm:$0xff]
        %v386 = vld [vmem:[#allocation2 + $0x50] sm:$0xff]
        %v387 = vld [vmem:[#allocation2 + $0x58] sm:$0xff]
        %v388 = vld [vmem:[#allocation2 + $0x60] sm:$0xff]
        %v389 = vld [vmem:[#allocation2 + $0x68] sm:$0xff]
        %v390 = vld [vmem:[#allocation2 + $0x70] sm:$0xff]
        %v391 = vld [vmem:[#allocation2 + $0x78] sm:$0xff]
        %v392 = vld [vmem:[#allocation2 + $0x80] sm:$0xff]
        %v393 = vld [vmem:[#allocation2 + $0x88] sm:$0xff]
        %v394 = vld [vmem:[#allocation2 + $0x90] sm:$0xff]
        %v395 = vld [vmem:[#allocation2 + $0x98] sm:$0xff]
        %v396 = vld [vmem:[#allocation2 + $0xa0] sm:$0xff]
        %v397 = vld [vmem:[#allocation2 + $0xa8] sm:$0xff]
        %v398 = vld [vmem:[#allocation2 + $0xb0] sm:$0xff]
        %v399 = vld [vmem:[#allocation2 + $0xb8] sm:$0xff]
        %v400 = vld [vmem:[#allocation2 + $0xc0] sm:$0xff]
        %v401 = vld [vmem:[#allocation2 + $0xc8] sm:$0xff]
        %v402 = vld [vmem:[#allocation2 + $0xd0] sm:$0xff]
        %v403 = vld [vmem:[#allocation2 + $0xd8] sm:$0xff]
        %v404 = vld [vmem:[#allocation2 + $0xe0] sm:$0xff]
        %v405 = vld [vmem:[#allocation2 + $0xe8] sm:$0xff]
        %v406 = vld [vmem:[#allocation2 + $0xf0] sm:$0xff]
        %v407 = vld [vmem:[#allocation2 + $0xf8] sm:$0xff]
        %v408 = vld [vmem:[%s4] sm:$0x1]
        %v410 = vlaneseq
        %v411 = vshrl.u32 %v410, 7
        %v412 = vsub.s32 0, %v411
        %v413 = vrot.slane %v408, %v412
        %415 = vmatprep.subr.mxu0 0.0
        %416 = vmatpush1.msra.mxu0 %v376
        %417 = vmatprep.subr.mxu0 0.0
        %418 = vmatpush1.msra.mxu0 %v377
        %419 = vmatprep.subr.mxu0 0.0
        %420 = vmatpush1.msra.mxu0 %v378
        %421 = vmatprep.subr.mxu0 0.0
        %422 = vmatpush1.msra.mxu0 %v379
        %423 = vmatprep.subr.mxu0 0.0
        %424 = vmatpush1.msra.mxu0 %v380
        %425 = vmatprep.subr.mxu0 0.0
        %426 = vmatpush1.msra.mxu0 %v381
        %427 = vmatprep.subr.mxu0 0.0
        %428 = vmatpush1.msra.mxu0 %v382
        %429 = vmatprep.subr.mxu0 0.0
        %430 = vmatpush1.msra.mxu0 %v383
        %431 = vmatprep.subr.mxu0 0.0
        %432 = vmatpush1.msra.mxu0 %v384
        %433 = vmatprep.subr.mxu0 0.0
        %434 = vmatpush1.msra.mxu0 %v385
        %435 = vmatprep.subr.mxu0 0.0
        %436 = vmatpush1.msra.mxu0 %v386
        %437 = vmatprep.subr.mxu0 0.0
        %438 = vmatpush1.msra.mxu0 %v387
        %439 = vmatprep.subr.mxu0 0.0
        %440 = vmatpush1.msra.mxu0 %v388
        %441 = vmatprep.subr.mxu0 0.0
        %442 = vmatpush1.msra.mxu0 %v389
        %443 = vmatprep.subr.mxu0 0.0
        %444 = vmatpush1.msra.mxu0 %v390
        %445 = vmatprep.subr.mxu0 0.0
        %446 = vmatpush1.msra.mxu0 %v391
        %447 = vmatprep.subr.mxu0 0.0
        %448 = vmatpush1.msra.mxu0 %v392
        %449 = vmatprep.subr.mxu0 0.0
        %450 = vmatpush1.msra.mxu0 %v393
        %451 = vmatprep.subr.mxu0 0.0
        %452 = vmatpush1.msra.mxu0 %v394
        %453 = vmatprep.subr.mxu0 0.0
        %454 = vmatpush1.msra.mxu0 %v395
        %455 = vmatprep.subr.mxu0 0.0
        %456 = vmatpush1.msra.mxu0 %v396
        %457 = vmatprep.subr.mxu0 0.0
        %458 = vmatpush1.msra.mxu0 %v397
        %459 = vmatprep.subr.mxu0 0.0
        %460 = vmatpush1.msra.mxu0 %v398
        %461 = vmatprep.subr.mxu0 0.0
        %462 = vmatpush1.msra.mxu0 %v399
        %463 = vmatprep.subr.mxu0 0.0
        %464 = vmatpush1.msra.mxu0 %v400
        %465 = vmatprep.subr.mxu0 0.0
        %466 = vmatpush1.msra.mxu0 %v401
        %467 = vmatprep.subr.mxu0 0.0
        %468 = vmatpush1.msra.mxu0 %v402
        %469 = vmatprep.subr.mxu0 0.0
        %470 = vmatpush1.msra.mxu0 %v403
        %471 = vmatprep.subr.mxu0 0.0
        %472 = vmatpush1.msra.mxu0 %v404
        %473 = vmatprep.subr.mxu0 0.0
        %474 = vmatpush1.msra.mxu0 %v405
        %475 = vmatprep.subr.mxu0 0.0
        %476 = vmatpush1.msra.mxu0 %v406
        %477 = vmatprep.subr.mxu0 0.0
        %478 = vmatpush1.msra.mxu0 %v407
        %479 = vmatprep.mubr.f32.mxu0 %v369
        %480 = vmatmul.mubr.f32.gmra.mrb[0].mxu0 %v368
        %v481 = vpop.f32.mrb[0].mxu0
        %v482 = vadd.f32 %v413, %v481
        %v483 = vpop.f32.mrb[0].mxu0
        %484 = vmatprep.mubr.f32.mxu0 %v371
        %485 = vmatmul.mubr.f32.gmra.mrb[0].mxu0 %v370
        %v486 = vpop.f32.mrb[0].mxu0
        %v487 = vadd.f32 %v413, %v486
        %v488 = vpop.f32.mrb[0].mxu0
        %489 = vmatprep.mubr.f32.mxu0 %v373
        %490 = vmatmul.mubr.f32.gmra.mrb[0].mxu0 %v372
        %v491 = vpop.f32.mrb[0].mxu0
        %v492 = vadd.f32 %v413, %v491
        %v493 = vpop.f32.mrb[0].mxu0
        %494 = vmatprep.mubr.f32.mxu0 %v375
        %495 = vmatmul.mubr.f32.gmra.mrb[0].mxu0 %v374
        %v496 = vpop.f32.mrb[0].mxu0
        %v497 = vadd.f32 %v413, %v496
        %v498 = vpop.f32.mrb[0].mxu0
        %499 = vdwg.mxu0
        %v500 = vlaneseq
        %v501 = vand.u32 %v500, 127
        %vm502 = vcmp.lt.s32.totalorder %v501, 3
        %v503 = vsel %vm502, %v482, -inf
        %v504 = vsel %vm502, %v487, -inf
        %v505 = vsel %vm502, %v492, -inf
        %v506 = vsel %vm502, %v497, -inf
        %507 = vmax.xlane.f32.xlu0 %v503
        %v508 = vpop.xlane.xlu0 %507
        %509 = vmax.xlane.f32.xlu0 %v504
        %v510 = vpop.xlane.xlu0 %509
        %511 = vmax.xlane.f32.xlu0 %v505
        %v512 = vpop.xlane.xlu0 %511
        %513 = vmax.xlane.f32.xlu0 %v506
        %v514 = vpop.xlane.xlu0 %513
        %v515 = vsub.f32 %v503, %v508
        %v516 = vsub.f32 %v504, %v510
        %v517 = vsub.f32 %v505, %v512
        %v518 = vsub.f32 %v506, %v514
        %v519 = vmul.f32 %v515, 1.442695
        %v520 = vpow.pop %v519
        %v521 = vmul.f32 %v516, 1.442695
        %v522 = vpow.pop %v521
        %v523 = vmul.f32 %v517, 1.442695
        %v524 = vpow.pop %v523
        %v525 = vmul.f32 %v518, 1.442695
        %v526 = vpow.pop %v525
        %527 = vadd.xlane.f32.xlu0 %v520
        %v528 = vpop.xlane.xlu0 %527
        %529 = vadd.xlane.f32.xlu0 %v522
        %v530 = vpop.xlane.xlu0 %529
        %531 = vadd.xlane.f32.xlu0 %v524
        %v532 = vpop.xlane.xlu0 %531
        %533 = vadd.xlane.f32.xlu0 %v526
        %v534 = vpop.xlane.xlu0 %533
        %v535 = vrcp.pop %v528
        %v536 = vmul.f32 %v520, %v535
        %v537 = vrcp.pop %v530
        %v538 = vmul.f32 %v522, %v537
        %v539 = vrcp.pop %v532
        %v540 = vmul.f32 %v524, %v539
        %v541 = vrcp.pop %v534
        %v542 = vmul.f32 %v526, %v541
        %v543 = vsel %vm502, %v536, %v482
        %v544 = vsel %vm502, %v538, %v487
        %v545 = vsel %vm502, %v540, %v492
        %v546 = vsel %vm502, %v542, %v497
        %547 = vst [vmem:[%s233] sm:$0xff] %v543
        %548 = vst [vmem:[%s233 + $0x8] sm:$0xff] %v544
        %549 = vst [vmem:[%s233 + $0x10] sm:$0xff] %v545
        %550 = vst [vmem:[%s233 + $0x18] sm:$0xff] %v546
        %s551 = sand.u32 %s138, 1
        %s552 = scalar_lea.sflag [#allocation4], %s551
        %s553 = sand.u32 %s138, 1
        %s554 = smul.addr %s553, 32
        %s555 = scalar_lea.vmem [#allocation5], %s554
        // Predicated region
        $region45: #{tpu_custom_call.1} parent=39 // pred_check
          %p556 = pneg %p148
        $region46: #{tpu_custom_call.1} parent=39 // pred_check_branch
          %558 = sbr.rel (%p556) target = $region48
        $region47: #{tpu_custom_call.1} parent=39 // pred_region
          %s559 = smul.u32 4, %s20
          %s561 = ssub.s32 512, 512
          %562 = vsyncadd %s552, %s561
          %s563 = smul.addr %s559, 128
          %s564 = scalar_lea.hbm %s5, %s563
          %s565 = sshll.u32 %s555, 4
          %s566 = int_to_ptr.vmem [resolvable:$true] %s565
          %571 = dma.vmem_to_hbm [thread:$0]  %s566, 512, %s564, %s552, 128, 128, 8
        $region48: #{tpu_custom_call.1} parent=39 // pred_fallthru
          _
      $region40: #{tpu_custom_call.1} parent=5 // pred_fallthru
        _
      %p572 = scmp.le.s32.totalorder 2, %s15
      // Predicated region
      $region49: #{tpu_custom_call.1} parent=5 // pred_check
        %p573 = pneg %p572
      $region50: #{tpu_custom_call.1} parent=5 // pred_check_branch
        %575 = sbr.rel (%p573) target = $region52
      $region51: #{tpu_custom_call.1} parent=5 // pred_region
        %s576 = ssub.s32 %s15, 2
        // Predicated region
        $region53: #{tpu_custom_call.1} parent=51 // pred_check
          %p577 = pneg %p154
        $region54: #{tpu_custom_call.1} parent=51 // pred_check_branch
          %579 = sbr.rel (%p577) target = $region56
        $region55: #{tpu_custom_call.1} parent=51 // pred_region
          %s580 = sand.u32 %s139, 1
          %s581 = scalar_lea.sflag [#allocation4], %s580
          %s582 = sand.u32 %s139, 1
          %s583 = smul.addr %s582, 32
          %s584 = scalar_lea.vmem [#allocation5], %s583
          %585 = dma.done %s581, 512
        $region56: #{tpu_custom_call.1} parent=51 // pred_fallthru
          _
      $region52: #{tpu_custom_call.1} parent=5 // pred_fallthru
        _
    $region6: #{tpu_custom_call.1} parent=1 // loop_footer
      %s19 = sadd.s32 1, %s15
    $region7: #{tpu_custom_call.1} parent=1 // loop_footer_branch
      %14 = sbr.rel target = $region3
    $region8: #{tpu_custom_call.1} parent=1 // loop_exit
      _
    %586 = vsyncpa [#allocation3], 1
    %s587 = scalar_lea.sflag [#allocation3], 1
    %588 = vsyncpa %s587, 1
    %589 = vsyncpa [#allocation4], 1
    %s590 = scalar_lea.sflag [#allocation4], 1
    %591 = vsyncpa %s590, 1

</llo_original>
